<compile_context>
chip_gen: v6e
topology: v6e:2x2x1
jax: 0.10.0
libtpu: 0.0.40
codegen_flags: <defaults>
</compile_context>

<pallas_src>
import jax
import jax.numpy as jnp
from jax.experimental import pallas as pl
from jax.experimental.pallas import tpu as pltpu
from jax.scipy.linalg import block_diag


def _gelu_exact(x):
    # nn.GELU() default = exact erf-based GELU
    inv_sqrt2 = jnp.asarray(0.7071067811865476, dtype=x.dtype)
    return 0.5 * x * (1.0 + jax.lax.erf(x * inv_sqrt2))


def embed_box_kernel(x_ref, g_ref,
                     w1_ref, b1_ref, w2_ref, b2_ref, w3_ref, b3_ref,
                     wg_ref, o_ref):
    x = x_ref[...].astype(jnp.float32)                                   # (TM, P*Cin)
    h = jnp.dot(x, w1_ref[...], preferred_element_type=jnp.float32) + b1_ref[...]
    h = _gelu_exact(h)                                                   # (TM, P*H)
    h = jnp.dot(h, w2_ref[...], preferred_element_type=jnp.float32) + b2_ref[...]
    h = _gelu_exact(h)                                                   # (TM, P*Cout)
    y = jnp.dot(h, w3_ref[...], preferred_element_type=jnp.float32) + b3_ref[...]
    # gauss term folded onto the MXU: (TM, P) @ (P, P*Cout)
    y = y + jnp.dot(g_ref[...].astype(jnp.float32), wg_ref[...],
                    preferred_element_type=jnp.float32)
    o_ref[...] = y.astype(o_ref.dtype)                                   # (TM, P*Cout)


def _round_up(x, m):
    return (x + m - 1) // m * m


def embed_box_forward(ltrb_label, gauss_label, params, *, tm_max=1024):
    """ltrb_label: (B, N, Cin), gauss_label: (B, N, 1) -> (B, N, Cout)."""
    B, N, Cin = ltrb_label.shape
    w1, b1, w2, b2, w3, b3, wemb = params
    H = w1.shape[1]
    Cout = w3.shape[1]
    M = B * N

    # --- pack P tokens per row so the hidden/output width is 128 lanes -----
    P = 4
    assert P * Cout == 128, "packing assumes out_features == 32"
    M_pad = _round_up(M, P)
    Mp = M_pad // P

    x2d = ltrb_label.reshape(M, Cin)
    g2d = gauss_label.reshape(M, 1)
    if M_pad != M:
        x2d = jnp.pad(x2d, ((0, M_pad - M), (0, 0)))
        g2d = jnp.pad(g2d, ((0, M_pad - M), (0, 0)))
    xp = x2d.reshape(Mp, P * Cin)          # (Mp, 16)
    gp = g2d.reshape(Mp, P)                # (Mp, 4)

    # Block-diagonal weights (token t only sees its own 32-lane slice).
    w1_bd = block_diag(*([w1] * P))                         # (P*Cin, P*H)
    w2_bd = block_diag(*([w2] * P))                         # (P*H,   P*Cout)
    w3_bd = block_diag(*([w3] * P))                         # (P*Cout,P*Cout)
    b1_bd = jnp.tile(b1.reshape(1, H), (1, P))              # (1, P*H)
    b2_bd = jnp.tile(b2.reshape(1, Cout), (1, P))           # (1, P*Cout)
    b3_bd = jnp.tile(b3.reshape(1, Cout), (1, P))           # (1, P*Cout)
    wg_bd = block_diag(*([wemb.reshape(1, Cout)] * P))      # (P, P*Cout)

    # Packed-row tile; sublane-aligned (multiple of 8 for f32).  Partial last
    # tile is fine: the math is row-local and OOB output rows are masked.
    TM = min(tm_max, _round_up(Mp, 8))
    grid = (pl.cdiv(Mp, TM),)

    def tile_spec(cols):
        return pl.BlockSpec((TM, cols), lambda i: (i, 0))

    def resident(shape):
        # Same block index every step -> stays VMEM-resident across the grid.
        return pl.BlockSpec(shape, lambda i: (0, 0))

    itemsize = jnp.dtype(ltrb_label.dtype).itemsize
    w_itemsize = jnp.dtype(w1.dtype).itemsize
    flops = 2 * Mp * (P * Cin * P * H + P * H * P * Cout
                      + P * Cout * P * Cout + P * P * Cout)
    # NOTE: erf lowers to a VPU polynomial, not one EUP op; this hint is a
    # lower bound on the transcendental-ish work.
    transcendentals = M * (H + Cout)
    bytes_accessed = (
        itemsize * Mp * (P * Cin + P + P * Cout)                 # x, gauss, out streams
        + w_itemsize * (w1_bd.size + w2_bd.size + w3_bd.size + wg_bd.size
                        + b1_bd.size + b2_bd.size + b3_bd.size)  # resident weights
    )

    out = pl.pallas_call(
        embed_box_kernel,
        out_shape=jax.ShapeDtypeStruct((Mp, P * Cout), ltrb_label.dtype),
        grid_spec=pltpu.PrefetchScalarGridSpec(
            num_scalar_prefetch=0,
            grid=grid,
            in_specs=[
                tile_spec(P * Cin),            # x  (packed)
                tile_spec(P),                  # gauss (packed)
                resident((P * Cin, P * H)),    # w1 block-diag
                resident((1, P * H)),          # b1
                resident((P * H, P * Cout)),   # w2 block-diag
                resident((1, P * Cout)),       # b2
                resident((P * Cout, P * Cout)),  # w3 block-diag
                resident((1, P * Cout)),       # b3
                resident((P, P * Cout)),       # gauss-embed matrix
            ],
            out_specs=tile_spec(P * Cout),
        ),
        compiler_params=pltpu.CompilerParams(
            dimension_semantics=("parallel",),
        ),
        cost_estimate=pl.CostEstimate(
            flops=flops,
            transcendentals=transcendentals,
            bytes_accessed=bytes_accessed,
        ),
    )(xp, gp, w1_bd, b1_bd, w2_bd, b2_bd, w3_bd, b3_bd, wg_bd)

    out = out.reshape(M_pad, Cout)[:M]
    return out.reshape(B, N, Cout)


def init_params(key, in_features, hidden_features, out_features, dtype=jnp.float32):
    """Deterministic synthetic parameters (nn.Linear semantics; weights stored
    pre-transposed as (in, out))."""
    ks = jax.random.split(key, 7)
    w1 = (jax.random.normal(ks[0], (in_features, hidden_features)) * 0.02).astype(dtype)
    b1 = (jax.random.normal(ks[1], (hidden_features,)) * 0.02).astype(dtype)
    w2 = (jax.random.normal(ks[2], (hidden_features, out_features)) * 0.02).astype(dtype)
    b2 = (jax.random.normal(ks[3], (out_features,)) * 0.02).astype(dtype)
    w3 = (jax.random.normal(ks[4], (out_features, out_features)) * 0.02).astype(dtype)
    b3 = (jax.random.normal(ks[5], (out_features,)) * 0.02).astype(dtype)
    wemb = (jax.random.normal(ks[6], (1, 1, out_features)) * 0.02).astype(dtype)
    return (w1, b1, w2, b2, w3, b3, wemb)


def reference_forward(ltrb_label, gauss_label, params):
    w1, b1, w2, b2, w3, b3, wemb = params
    h = _gelu_exact(ltrb_label @ w1 + b1)
    h = _gelu_exact(h @ w2 + b2)
    return h @ w3 + b3 + gauss_label * wemb.reshape(1, 1, -1)


if __name__ == "__main__":
    in_features, hidden_features, out_features = 4, 32, 32

    key = jax.random.PRNGKey(0)
    k_x, k_g, k_p, k_x2, k_g2, k_x3, k_g3 = jax.random.split(key, 7)
    params = init_params(k_p, in_features, hidden_features, out_features)

    # --- small shape, matches module spec (single grid step) ---------------
    B, N = 2, 8
    ltrb_label = jax.random.normal(k_x, (B, N, in_features), dtype=jnp.float32)
    gauss_label = jax.random.uniform(k_g, (B, N, 1), dtype=jnp.float32)

    out = embed_box_forward(ltrb_label, gauss_label, params)
    out = jax.block_until_ready(out)
    ref = reference_forward(ltrb_label, gauss_label, params)
    assert out.shape == (B, N, out_features)
    assert jnp.allclose(out, ref, atol=1e-5, rtol=1e-5)

    # --- multi-tile check: exercises the grid + partial last tile ----------
    B2, N2 = 2, 1000  # M=2000 -> Mp=500 packed rows; tm_max=128 -> 4 grid steps
    ltrb2 = jax.random.normal(k_x2, (B2, N2, in_features), dtype=jnp.float32)
    gauss2 = jax.random.uniform(k_g2, (B2, N2, 1), dtype=jnp.float32)

    out2 = embed_box_forward(ltrb2, gauss2, params, tm_max=128)
    out2 = jax.block_until_ready(out2)
    ref2 = reference_forward(ltrb2, gauss2, params)
    assert out2.shape == (B2, N2, out_features)
    assert jnp.allclose(out2, ref2, atol=1e-5, rtol=1e-5)

    # --- token count not a multiple of 4: exercises pack-padding -----------
    B3, N3 = 1, 7  # M=7 -> padded to 8 tokens, 2 packed rows, block > array
    ltrb3 = jax.random.normal(k_x3, (B3, N3, in_features), dtype=jnp.float32)
    gauss3 = jax.random.uniform(k_g3, (B3, N3, 1), dtype=jnp.float32)

    out3 = embed_box_forward(ltrb3, gauss3, params)
    out3 = jax.block_until_ready(out3)
    ref3 = reference_forward(ltrb3, gauss3, params)
    assert out3.shape == (B3, N3, out_features)
    assert jnp.allclose(out3, ref3, atol=1e-5, rtol=1e-5)

    print("KERNEL_OK")
</pallas_src>

<mosaic_0001>
module attributes {stable_mosaic.version = 11 : i64} {
  func.func @embed_box_kernel(%arg0: i32, %arg1: memref<8x16xf32, #tpu.memory_space<vmem>>, %arg2: memref<8x4xf32, #tpu.memory_space<vmem>>, %arg3: memref<16x128xf32, #tpu.memory_space<vmem>>, %arg4: memref<1x128xf32, #tpu.memory_space<vmem>>, %arg5: memref<128x128xf32, #tpu.memory_space<vmem>>, %arg6: memref<1x128xf32, #tpu.memory_space<vmem>>, %arg7: memref<128x128xf32, #tpu.memory_space<vmem>>, %arg8: memref<1x128xf32, #tpu.memory_space<vmem>>, %arg9: memref<4x128xf32, #tpu.memory_space<vmem>>, %arg10: memref<8x128xf32, #tpu.memory_space<vmem>>) attributes {dimension_semantics = [#tpu.dimension_semantics<parallel>], iteration_bounds = array<i64: 1>, scalar_prefetch = 0 : i64, scratch_operands = 0 : i64, tpu.core_type = #tpu.core_type<tc>, window_params = [{transform_indices = @transform_0, window_bounds = array<i64: 8, 16>}, {transform_indices = @transform_1, window_bounds = array<i64: 8, 4>}, {pipeline_mode = #tpu.pipeline_mode<synchronous>, transform_indices = @transform_2, window_bounds = array<i64: 16, 128>}, {pipeline_mode = #tpu.pipeline_mode<synchronous>, transform_indices = @transform_3, window_bounds = array<i64: 1, 128>}, {pipeline_mode = #tpu.pipeline_mode<synchronous>, transform_indices = @transform_4, window_bounds = array<i64: 128, 128>}, {pipeline_mode = #tpu.pipeline_mode<synchronous>, transform_indices = @transform_5, window_bounds = array<i64: 1, 128>}, {pipeline_mode = #tpu.pipeline_mode<synchronous>, transform_indices = @transform_6, window_bounds = array<i64: 128, 128>}, {pipeline_mode = #tpu.pipeline_mode<synchronous>, transform_indices = @transform_7, window_bounds = array<i64: 1, 128>}, {pipeline_mode = #tpu.pipeline_mode<synchronous>, transform_indices = @transform_8, window_bounds = array<i64: 4, 128>}, {transform_indices = @transform_9, window_bounds = array<i64: 8, 128>}]} {
    %c0 = arith.constant 0 : index
    %c0_0 = arith.constant 0 : index
    %0 = vector.load %arg1[%c0, %c0_0] : memref<8x16xf32, #tpu.memory_space<vmem>>, vector<8x16xf32>
    %c0_1 = arith.constant 0 : index
    %c0_2 = arith.constant 0 : index
    %1 = vector.load %arg3[%c0_1, %c0_2] : memref<16x128xf32, #tpu.memory_space<vmem>>, vector<16x128xf32>
    %cst = arith.constant dense<0.000000e+00> : vector<8x128xf32>
    %2 = tpu.matmul %0, %1, %cst {dimension_numbers = #tpu.dot_dimension_numbers<[1], [0], [0], [1], [0, 0, 1, 1], [], []>} : vector<8x16xf32>, vector<16x128xf32>, vector<8x128xf32> -> vector<8x128xf32>
    %c0_3 = arith.constant 0 : index
    %c0_4 = arith.constant 0 : index
    %3 = vector.load %arg4[%c0_3, %c0_4] : memref<1x128xf32, #tpu.memory_space<vmem>>, vector<1x128xf32>
    %4 = vector.broadcast %3 : vector<1x128xf32> to vector<8x128xf32>
    %5 = arith.addf %2, %4 : vector<8x128xf32>
    %cst_5 = arith.constant 5.000000e-01 : f32
    %6 = vector.broadcast %cst_5 : f32 to vector<8x128xf32>
    %7 = arith.mulf %6, %5 : vector<8x128xf32>
    %cst_6 = arith.constant 0.707106769 : f32
    %8 = vector.broadcast %cst_6 : f32 to vector<8x128xf32>
    %9 = arith.mulf %5, %8 : vector<8x128xf32>
    %10 = math.erf %9 : vector<8x128xf32>
    %cst_7 = arith.constant 1.000000e+00 : f32
    %11 = vector.broadcast %cst_7 : f32 to vector<8x128xf32>
    %12 = arith.addf %11, %10 : vector<8x128xf32>
    %13 = arith.mulf %7, %12 : vector<8x128xf32>
    %c0_8 = arith.constant 0 : index
    %c0_9 = arith.constant 0 : index
    %14 = vector.load %arg5[%c0_8, %c0_9] : memref<128x128xf32, #tpu.memory_space<vmem>>, vector<128x128xf32>
    %cst_10 = arith.constant dense<0.000000e+00> : vector<8x128xf32>
    %15 = tpu.matmul %13, %14, %cst_10 {dimension_numbers = #tpu.dot_dimension_numbers<[1], [0], [0], [1], [0, 0, 1, 1], [], []>} : vector<8x128xf32>, vector<128x128xf32>, vector<8x128xf32> -> vector<8x128xf32>
    %c0_11 = arith.constant 0 : index
    %c0_12 = arith.constant 0 : index
    %16 = vector.load %arg6[%c0_11, %c0_12] : memref<1x128xf32, #tpu.memory_space<vmem>>, vector<1x128xf32>
    %17 = vector.broadcast %16 : vector<1x128xf32> to vector<8x128xf32>
    %18 = arith.addf %15, %17 : vector<8x128xf32>
    %cst_13 = arith.constant 5.000000e-01 : f32
    %19 = vector.broadcast %cst_13 : f32 to vector<8x128xf32>
    %20 = arith.mulf %19, %18 : vector<8x128xf32>
    %cst_14 = arith.constant 0.707106769 : f32
    %21 = vector.broadcast %cst_14 : f32 to vector<8x128xf32>
    %22 = arith.mulf %18, %21 : vector<8x128xf32>
    %23 = math.erf %22 : vector<8x128xf32>
    %cst_15 = arith.constant 1.000000e+00 : f32
    %24 = vector.broadcast %cst_15 : f32 to vector<8x128xf32>
    %25 = arith.addf %24, %23 : vector<8x128xf32>
    %26 = arith.mulf %20, %25 : vector<8x128xf32>
    %c0_16 = arith.constant 0 : index
    %c0_17 = arith.constant 0 : index
    %27 = vector.load %arg7[%c0_16, %c0_17] : memref<128x128xf32, #tpu.memory_space<vmem>>, vector<128x128xf32>
    %cst_18 = arith.constant dense<0.000000e+00> : vector<8x128xf32>
    %28 = tpu.matmul %26, %27, %cst_18 {dimension_numbers = #tpu.dot_dimension_numbers<[1], [0], [0], [1], [0, 0, 1, 1], [], []>} : vector<8x128xf32>, vector<128x128xf32>, vector<8x128xf32> -> vector<8x128xf32>
    %c0_19 = arith.constant 0 : index
    %c0_20 = arith.constant 0 : index
    %29 = vector.load %arg8[%c0_19, %c0_20] : memref<1x128xf32, #tpu.memory_space<vmem>>, vector<1x128xf32>
    %30 = vector.broadcast %29 : vector<1x128xf32> to vector<8x128xf32>
    %31 = arith.addf %28, %30 : vector<8x128xf32>
    %c0_21 = arith.constant 0 : index
    %c0_22 = arith.constant 0 : index
    %32 = vector.load %arg2[%c0_21, %c0_22] : memref<8x4xf32, #tpu.memory_space<vmem>>, vector<8x4xf32>
    %c0_23 = arith.constant 0 : index
    %c0_24 = arith.constant 0 : index
    %33 = vector.load %arg9[%c0_23, %c0_24] : memref<4x128xf32, #tpu.memory_space<vmem>>, vector<4x128xf32>
    %cst_25 = arith.constant dense<0.000000e+00> : vector<8x128xf32>
    %34 = tpu.matmul %32, %33, %cst_25 {dimension_numbers = #tpu.dot_dimension_numbers<[1], [0], [0], [1], [0, 0, 1, 1], [], []>} : vector<8x4xf32>, vector<4x128xf32>, vector<8x128xf32> -> vector<8x128xf32>
    %35 = arith.addf %31, %34 : vector<8x128xf32>
    %c0_26 = arith.constant 0 : index
    %c0_27 = arith.constant 0 : index
    %36 = vector.load %arg10[%c0_26, %c0_27] : memref<8x128xf32, #tpu.memory_space<vmem>>, vector<8x128xf32>
    tpu.vector_store %arg10[%c0_26, %c0_27], %35 {strides = array<i32>} : memref<8x128xf32, #tpu.memory_space<vmem>>, vector<8x128xf32>,
    return
  }
  func.func @transform_0(%arg0: i32) -> (i32, i32) {
    %c0_i32 = arith.constant 0 : i32
    %c0_i32_0 = arith.constant 0 : i32
    return %arg0, %c0_i32 : i32, i32
  }
  func.func @transform_1(%arg0: i32) -> (i32, i32) {
    %c0_i32 = arith.constant 0 : i32
    %c0_i32_0 = arith.constant 0 : i32
    return %arg0, %c0_i32 : i32, i32
  }
  func.func @transform_2(%arg0: i32) -> (i32, i32) {
    %c0_i32 = arith.constant 0 : i32
    %c0_i32_0 = arith.constant 0 : i32
    %c0_i32_1 = arith.constant 0 : i32
    return %c0_i32, %c0_i32_0 : i32, i32
  }
  func.func @transform_3(%arg0: i32) -> (i32, i32) {
    %c0_i32 = arith.constant 0 : i32
    %c0_i32_0 = arith.constant 0 : i32
    %c0_i32_1 = arith.constant 0 : i32
    return %c0_i32, %c0_i32_0 : i32, i32
  }
  func.func @transform_4(%arg0: i32) -> (i32, i32) {
    %c0_i32 = arith.constant 0 : i32
    %c0_i32_0 = arith.constant 0 : i32
    %c0_i32_1 = arith.constant 0 : i32
    return %c0_i32, %c0_i32_0 : i32, i32
  }
  func.func @transform_5(%arg0: i32) -> (i32, i32) {
    %c0_i32 = arith.constant 0 : i32
    %c0_i32_0 = arith.constant 0 : i32
    %c0_i32_1 = arith.constant 0 : i32
    return %c0_i32, %c0_i32_0 : i32, i32
  }
  func.func @transform_6(%arg0: i32) -> (i32, i32) {
    %c0_i32 = arith.constant 0 : i32
    %c0_i32_0 = arith.constant 0 : i32
    %c0_i32_1 = arith.constant 0 : i32
    return %c0_i32, %c0_i32_0 : i32, i32
  }
  func.func @transform_7(%arg0: i32) -> (i32, i32) {
    %c0_i32 = arith.constant 0 : i32
    %c0_i32_0 = arith.constant 0 : i32
    %c0_i32_1 = arith.constant 0 : i32
    return %c0_i32, %c0_i32_0 : i32, i32
  }
  func.func @transform_8(%arg0: i32) -> (i32, i32) {
    %c0_i32 = arith.constant 0 : i32
    %c0_i32_0 = arith.constant 0 : i32
    %c0_i32_1 = arith.constant 0 : i32
    return %c0_i32, %c0_i32_0 : i32, i32
  }
  func.func @transform_9(%arg0: i32) -> (i32, i32) {
    %c0_i32 = arith.constant 0 : i32
    %c0_i32_0 = arith.constant 0 : i32
    return %arg0, %c0_i32 : i32, i32
  }
}

</mosaic_0001>

<llo_original>
// kernel: tpu_custom_call.1
$region0: #{tpu_custom_call.1}
  #allocation0 [shape = 'u32[]', space=smem, size = 0x4, offset = 0x4, fixed_abs, tag = 'smem constant byte address 0x4 - core index']
  #allocation1 [shape = 'u32[144,128]{1,0:T(1,128)}', space=vmem, size = 0x12000, scoped, tag = 'internal scratch']
  %s0 = inlined_call_operand.hbm [shape: f32[4,16], index: 0, kind: input, shape index: {}]
  %s1 = inlined_call_operand.hbm [shape: f32[4,4], index: 1, kind: input, shape index: {}]
  %s2 = inlined_call_operand.hbm [shape: f32[16,128], index: 2, kind: input, shape index: {}]
  %s3 = inlined_call_operand.vmem [shape: f32[1,128], index: 3, kind: input, shape index: {}]
  %s4 = inlined_call_operand.hbm [shape: f32[128,128], index: 4, kind: input, shape index: {}]
  %s5 = inlined_call_operand.vmem [shape: f32[1,128], index: 5, kind: input, shape index: {}]
  %s6 = inlined_call_operand.hbm [shape: f32[128,128], index: 6, kind: input, shape index: {}]
  %s7 = inlined_call_operand.vmem [shape: f32[1,128], index: 7, kind: input, shape index: {}]
  %s8 = inlined_call_operand.vmem [shape: f32[4,128], index: 8, kind: input, shape index: {}]
  %s9 = inlined_call_operand.hbm [shape: f32[4,128], index: 9, kind: output, shape index: {}]
  %s10 = sld [smem:[#allocation0]]
  $region66: #{tpu_custom_call.1} parent=0
    _
  %s12 = ssub.s32 1, %s10
  %s13 = scalar_select 0, %s12, %s10
  $region1: #{tpu_custom_call.1} parent=0
    #allocation2 [shape = 'u8[4096]{0}', space=vmem, size = 0x1000, scoped, tag = 'input window, operand 0, single buffered']
    #allocation3 [shape = 's32[1]{0}', space=sflag, size = 0x4, scoped, tag = 'scoped memory for tpu_custom_call.1']
    #allocation4 [shape = 's32[1]{0}', space=sflag, size = 0x4, scoped, tag = 'scoped memory for tpu_custom_call.1']
    #allocation5 [shape = 'u8[4096]{0}', space=vmem, size = 0x1000, scoped, tag = 'input window, operand 1, single buffered']
    #allocation6 [shape = 's32[1]{0}', space=sflag, size = 0x4, scoped, tag = 'scoped memory for tpu_custom_call.1']
    #allocation7 [shape = 'u8[8192]{0}', space=vmem, size = 0x2000, scoped, tag = 'input window, operand 2, single buffered']
    #allocation8 [shape = 'u8[65536]{0}', space=vmem, size = 0x10000, scoped, tag = 'input window, operand 4, single buffered']
    #allocation9 [shape = 's32[1]{0}', space=sflag, size = 0x4, scoped, tag = 'scoped memory for tpu_custom_call.1']
    #allocation10 [shape = 'u8[65536]{0}', space=vmem, size = 0x10000, scoped, tag = 'input window, operand 6, single buffered']
    #allocation11 [shape = 'u8[4096]{0}', space=vmem, size = 0x1000, scoped, tag = 'output window, operand 0, single buffered']
    %14 = vsyncpa [#allocation3], 0
    %15 = vsyncpa [#allocation6], 0
    %16 = vsyncpa [#allocation9], 0
    %17 = vsyncpa [#allocation4], 0
    // Predicated region
    $region2: #{tpu_custom_call.1} parent=1 // pred_check
      _
    $region3: #{tpu_custom_call.1} parent=1 // pred_check_branch
      %19 = sbr.rel (0) target = $region5
    $region4: #{tpu_custom_call.1} parent=1 // pred_region
      %s21 = ssub.s32 128, 64
      %22 = vsyncadd [#allocation3], %s21
      %s23 = sshll.u32 [#allocation2], 4
      %s24 = int_to_ptr.vmem [resolvable:$true] %s23
      %29 = dma.hbm_to_vmem [thread:$0]  %s0, 64, %s24, [#allocation3], 64, 64, 4
    $region5: #{tpu_custom_call.1} parent=1 // pred_fallthru
      _
    // Predicated region
    $region6: #{tpu_custom_call.1} parent=1 // pred_check
      _
    $region7: #{tpu_custom_call.1} parent=1 // pred_check_branch
      %31 = sbr.rel (0) target = $region9
    $region8: #{tpu_custom_call.1} parent=1 // pred_region
      %s33 = ssub.s32 128, 64
      %34 = vsyncadd [#allocation6], %s33
      %s35 = sshll.u32 [#allocation5], 4
      %s36 = int_to_ptr.vmem [resolvable:$true] %s35
      %41 = dma.hbm_to_vmem [thread:$0]  %s1, 64, %s36, [#allocation6], 64, 64, 4
    $region9: #{tpu_custom_call.1} parent=1 // pred_fallthru
      _
    // Predicated region
    $region10: #{tpu_custom_call.1} parent=1 // pred_check
      _
    $region11: #{tpu_custom_call.1} parent=1 // pred_check_branch
      %43 = sbr.rel (0) target = $region13
    $region12: #{tpu_custom_call.1} parent=1 // pred_region
      %s45 = ssub.s32 256, 256
      %46 = vsyncadd [#allocation6], %s45
      %s47 = sshll.u32 [#allocation7], 4
      %s48 = int_to_ptr.vmem [resolvable:$true] %s47
      %53 = dma.hbm_to_vmem [thread:$0]  %s2, 256, %s48, [#allocation6], 128, 128, 8
    $region13: #{tpu_custom_call.1} parent=1 // pred_fallthru
      _
    // Predicated region
    $region14: #{tpu_custom_call.1} parent=1 // pred_check
      _
    $region15: #{tpu_custom_call.1} parent=1 // pred_check_branch
      %55 = sbr.rel (0) target = $region17
    $region16: #{tpu_custom_call.1} parent=1 // pred_region
      _
    $region17: #{tpu_custom_call.1} parent=1 // pred_fallthru
      _
    // Predicated region
    $region18: #{tpu_custom_call.1} parent=1 // pred_check
      _
    $region19: #{tpu_custom_call.1} parent=1 // pred_check_branch
      %57 = sbr.rel (0) target = $region21
    $region20: #{tpu_custom_call.1} parent=1 // pred_region
      %s59 = ssub.s32 2048, 2048
      %60 = vsyncadd [#allocation9], %s59
      %s61 = sshll.u32 [#allocation8], 4
      %s62 = int_to_ptr.vmem [resolvable:$true] %s61
      %67 = dma.hbm_to_vmem [thread:$0]  %s4, 2048, %s62, [#allocation9], 128, 128, 8
    $region21: #{tpu_custom_call.1} parent=1 // pred_fallthru
      _
    // Predicated region
    $region22: #{tpu_custom_call.1} parent=1 // pred_check
      _
    $region23: #{tpu_custom_call.1} parent=1 // pred_check_branch
      %69 = sbr.rel (0) target = $region25
    $region24: #{tpu_custom_call.1} parent=1 // pred_region
      _
    $region25: #{tpu_custom_call.1} parent=1 // pred_fallthru
      _
    // Predicated region
    $region26: #{tpu_custom_call.1} parent=1 // pred_check
      _
    $region27: #{tpu_custom_call.1} parent=1 // pred_check_branch
      %71 = sbr.rel (0) target = $region29
    $region28: #{tpu_custom_call.1} parent=1 // pred_region
      %s73 = ssub.s32 2048, 2048
      %74 = vsyncadd [#allocation9], %s73
      %s75 = sshll.u32 [#allocation10], 4
      %s76 = int_to_ptr.vmem [resolvable:$true] %s75
      %81 = dma.hbm_to_vmem [thread:$0]  %s6, 2048, %s76, [#allocation9], 128, 128, 8
    $region29: #{tpu_custom_call.1} parent=1 // pred_fallthru
      _
    // Predicated region
    $region30: #{tpu_custom_call.1} parent=1 // pred_check
      _
    $region31: #{tpu_custom_call.1} parent=1 // pred_check_branch
      %83 = sbr.rel (0) target = $region33
    $region32: #{tpu_custom_call.1} parent=1 // pred_region
      _
    $region33: #{tpu_custom_call.1} parent=1 // pred_fallthru
      _
    // Predicated region
    $region34: #{tpu_custom_call.1} parent=1 // pred_check
      _
    $region35: #{tpu_custom_call.1} parent=1 // pred_check_branch
      %85 = sbr.rel (0) target = $region37
    $region36: #{tpu_custom_call.1} parent=1 // pred_region
      _
    $region37: #{tpu_custom_call.1} parent=1 // pred_fallthru
      _
    // Predicated region
    $region38: #{tpu_custom_call.1} parent=1 // pred_check
      _
    $region39: #{tpu_custom_call.1} parent=1 // pred_check_branch
      %87 = sbr.rel (0) target = $region41
    $region40: #{tpu_custom_call.1} parent=1 // pred_region
      %88 = dma.done [#allocation3], 128
    $region41: #{tpu_custom_call.1} parent=1 // pred_fallthru
      _
    // Predicated region
    $region42: #{tpu_custom_call.1} parent=1 // pred_check
      _
    $region43: #{tpu_custom_call.1} parent=1 // pred_check_branch
      %90 = sbr.rel (0) target = $region45
    $region44: #{tpu_custom_call.1} parent=1 // pred_region
      %91 = dma.done [#allocation6], 128
    $region45: #{tpu_custom_call.1} parent=1 // pred_fallthru
      _
    // Predicated region
    $region46: #{tpu_custom_call.1} parent=1 // pred_check
      _
    $region47: #{tpu_custom_call.1} parent=1 // pred_check_branch
      %93 = sbr.rel (0) target = $region49
    $region48: #{tpu_custom_call.1} parent=1 // pred_region
      %94 = dma.done [#allocation6], 256
    $region49: #{tpu_custom_call.1} parent=1 // pred_fallthru
      _
    // Predicated region
    $region50: #{tpu_custom_call.1} parent=1 // pred_check
      _
    $region51: #{tpu_custom_call.1} parent=1 // pred_check_branch
      %96 = sbr.rel (0) target = $region53
    $region52: #{tpu_custom_call.1} parent=1 // pred_region
      %97 = dma.done [#allocation9], 2048
    $region53: #{tpu_custom_call.1} parent=1 // pred_fallthru
      _
    // Predicated region
    $region54: #{tpu_custom_call.1} parent=1 // pred_check
      _
    $region55: #{tpu_custom_call.1} parent=1 // pred_check_branch
      %99 = sbr.rel (0) target = $region57
    $region56: #{tpu_custom_call.1} parent=1 // pred_region
      %100 = dma.done [#allocation9], 2048
    $region57: #{tpu_custom_call.1} parent=1 // pred_fallthru
      _
    %v101 = vld [vmem:[#allocation2] sm:$0xff]
    %v102 = vld [vmem:[#allocation7] sm:$0xff]
    %v103 = vld [vmem:[#allocation7 + $0x8] sm:$0xff]
    %v104 = vld [vmem:[%s3] sm:$0x1]
    %v106 = vlaneseq
    %v107 = vshrl.u32 %v106, 7
    %v108 = vsub.s32 0, %v107
    %v109 = vrot.slane %v104, %v108
    %vm111 = vcmask 130048
    %v113 = vsel %vm111, %v101, 0
    %115 = vmatprep.subr.mxu0 0.0
    %116 = vmatpush1.msra.mxu0 0.0
    %117 = vmatprep.subr.mxu0 0.0
    %118 = vmatpush1.msra.mxu0 0.0
    %119 = vmatprep.subr.mxu0 0.0
    %120 = vmatpush1.msra.mxu0 0.0
    %121 = vmatprep.subr.mxu0 0.0
    %122 = vmatpush1.msra.mxu0 0.0
    %123 = vmatprep.subr.mxu0 0.0
    %124 = vmatpush1.msra.mxu0 0.0
    %125 = vmatprep.subr.mxu0 0.0
    %126 = vmatpush1.msra.mxu0 0.0
    %127 = vmatprep.subr.mxu0 0.0
    %128 = vmatpush1.msra.mxu0 0.0
    %129 = vmatprep.subr.mxu0 0.0
    %130 = vmatpush1.msra.mxu0 0.0
    %131 = vmatprep.subr.mxu0 0.0
    %132 = vmatpush1.msra.mxu0 0.0
    %133 = vmatprep.subr.mxu0 0.0
    %134 = vmatpush1.msra.mxu0 0.0
    %135 = vmatprep.subr.mxu0 0.0
    %136 = vmatpush1.msra.mxu0 0.0
    %137 = vmatprep.subr.mxu0 0.0
    %138 = vmatpush1.msra.mxu0 0.0
    %139 = vmatprep.subr.mxu0 0.0
    %140 = vmatpush1.msra.mxu0 0.0
    %141 = vmatprep.subr.mxu0 0.0
    %142 = vmatpush1.msra.mxu0 0.0
    %143 = vmatprep.subr.mxu0 0.0
    %144 = vmatpush1.msra.mxu0 %v103
    %145 = vmatprep.subr.mxu0 0.0
    %146 = vmatpush1.msra.mxu0 %v102
    %147 = vmatprep.subr.mxu0 0.0
    %148 = vmatpush2.msra.mxu0 0.0
    %149 = vmatprep.subr.mxu0 0.0
    %150 = vmatpush2.msra.mxu0 0.0
    %151 = vmatprep.subr.mxu0 0.0
    %152 = vmatpush2.msra.mxu0 0.0
    %153 = vmatprep.subr.mxu0 0.0
    %154 = vmatpush2.msra.mxu0 0.0
    %155 = vmatprep.subr.mxu0 0.0
    %156 = vmatpush2.msra.mxu0 0.0
    %157 = vmatprep.subr.mxu0 0.0
    %158 = vmatpush2.msra.mxu0 0.0
    %159 = vmatprep.subr.mxu0 0.0
    %160 = vmatpush2.msra.mxu0 0.0
    %161 = vmatprep.subr.mxu0 0.0
    %162 = vmatpush2.msra.mxu0 0.0
    %163 = vmatprep.subr.mxu0 0.0
    %164 = vmatpush2.msra.mxu0 0.0
    %165 = vmatprep.subr.mxu0 0.0
    %166 = vmatpush2.msra.mxu0 0.0
    %167 = vmatprep.subr.mxu0 0.0
    %168 = vmatpush2.msra.mxu0 0.0
    %169 = vmatprep.subr.mxu0 0.0
    %170 = vmatpush2.msra.mxu0 0.0
    %171 = vmatprep.subr.mxu0 0.0
    %172 = vmatpush2.msra.mxu0 0.0
    %173 = vmatprep.subr.mxu0 0.0
    %174 = vmatpush2.msra.mxu0 0.0
    %175 = vmatprep.subr.mxu0 0.0
    %176 = vmatpush2.msra.mxu0 0.0
    %177 = vmatprep.subr.mxu0 0.0
    %178 = vmatpush2.msra.mxu0 0.0
    %179 = vmatprep.mubr.f32.mxu0 0.0
    %180 = vmatmul.mubr.f32.gmra.mxu0 %v113
    %v181 = vpop.f32.mrf.mxu0
    %v182 = vadd.f32 %v109, %v181
    %v183 = vpop.f32.mrf.mxu0
    %184 = vdwg.mxu0
    %v185 = vmul.f32 %v182, 0.5
    %v186 = vmul.f32 %v182, 0.70710677
    %v187 = verf.f32.pop %v186
    %v188 = vadd.f32 %v187, 1.0
    %v189 = vmul.f32 %v185, %v188
    %v190 = vld [vmem:[#allocation8] sm:$0xff]
    %v191 = vld [vmem:[#allocation8 + $0x8] sm:$0xff]
    %v192 = vld [vmem:[#allocation8 + $0x10] sm:$0xff]
    %v193 = vld [vmem:[#allocation8 + $0x18] sm:$0xff]
    %v194 = vld [vmem:[#allocation8 + $0x20] sm:$0xff]
    %v195 = vld [vmem:[#allocation8 + $0x28] sm:$0xff]
    %v196 = vld [vmem:[#allocation8 + $0x30] sm:$0xff]
    %v197 = vld [vmem:[#allocation8 + $0x38] sm:$0xff]
    %v198 = vld [vmem:[#allocation8 + $0x40] sm:$0xff]
    %v199 = vld [vmem:[#allocation8 + $0x48] sm:$0xff]
    %v200 = vld [vmem:[#allocation8 + $0x50] sm:$0xff]
    %v201 = vld [vmem:[#allocation8 + $0x58] sm:$0xff]
    %v202 = vld [vmem:[#allocation8 + $0x60] sm:$0xff]
    %v203 = vld [vmem:[#allocation8 + $0x68] sm:$0xff]
    %v204 = vld [vmem:[#allocation8 + $0x70] sm:$0xff]
    %v205 = vld [vmem:[#allocation8 + $0x78] sm:$0xff]
    %v206 = vld [vmem:[%s5] sm:$0x1]
    %v208 = vlaneseq
    %v209 = vshrl.u32 %v208, 7
    %v210 = vsub.s32 0, %v209
    %v211 = vrot.slane %v206, %v210
    %213 = vmatprep.subr.mxu0 0.0
    %214 = vmatpush1.msra.mxu0 %v205
    %215 = vmatprep.subr.mxu0 0.0
    %216 = vmatpush1.msra.mxu0 %v204
    %217 = vmatprep.subr.mxu0 0.0
    %218 = vmatpush1.msra.mxu0 %v203
    %219 = vmatprep.subr.mxu0 0.0
    %220 = vmatpush1.msra.mxu0 %v202
    %221 = vmatprep.subr.mxu0 0.0
    %222 = vmatpush1.msra.mxu0 %v201
    %223 = vmatprep.subr.mxu0 0.0
    %224 = vmatpush1.msra.mxu0 %v200
    %225 = vmatprep.subr.mxu0 0.0
    %226 = vmatpush1.msra.mxu0 %v199
    %227 = vmatprep.subr.mxu0 0.0
    %228 = vmatpush1.msra.mxu0 %v198
    %229 = vmatprep.subr.mxu0 0.0
    %230 = vmatpush1.msra.mxu0 %v197
    %231 = vmatprep.subr.mxu0 0.0
    %232 = vmatpush1.msra.mxu0 %v196
    %233 = vmatprep.subr.mxu0 0.0
    %234 = vmatpush1.msra.mxu0 %v195
    %235 = vmatprep.subr.mxu0 0.0
    %236 = vmatpush1.msra.mxu0 %v194
    %237 = vmatprep.subr.mxu0 0.0
    %238 = vmatpush1.msra.mxu0 %v193
    %239 = vmatprep.subr.mxu0 0.0
    %240 = vmatpush1.msra.mxu0 %v192
    %241 = vmatprep.subr.mxu0 0.0
    %242 = vmatpush1.msra.mxu0 %v191
    %243 = vmatprep.subr.mxu0 0.0
    %244 = vmatpush1.msra.mxu0 %v190
    %245 = vmatprep.subr.mxu0 0.0
    %246 = vmatpush2.msra.mxu0 0.0
    %247 = vmatprep.subr.mxu0 0.0
    %248 = vmatpush2.msra.mxu0 0.0
    %249 = vmatprep.subr.mxu0 0.0
    %250 = vmatpush2.msra.mxu0 0.0
    %251 = vmatprep.subr.mxu0 0.0
    %252 = vmatpush2.msra.mxu0 0.0
    %253 = vmatprep.subr.mxu0 0.0
    %254 = vmatpush2.msra.mxu0 0.0
    %255 = vmatprep.subr.mxu0 0.0
    %256 = vmatpush2.msra.mxu0 0.0
    %257 = vmatprep.subr.mxu0 0.0
    %258 = vmatpush2.msra.mxu0 0.0
    %259 = vmatprep.subr.mxu0 0.0
    %260 = vmatpush2.msra.mxu0 0.0
    %261 = vmatprep.subr.mxu0 0.0
    %262 = vmatpush2.msra.mxu0 0.0
    %263 = vmatprep.subr.mxu0 0.0
    %264 = vmatpush2.msra.mxu0 0.0
    %265 = vmatprep.subr.mxu0 0.0
    %266 = vmatpush2.msra.mxu0 0.0
    %267 = vmatprep.subr.mxu0 0.0
    %268 = vmatpush2.msra.mxu0 0.0
    %269 = vmatprep.subr.mxu0 0.0
    %270 = vmatpush2.msra.mxu0 0.0
    %271 = vmatprep.subr.mxu0 0.0
    %272 = vmatpush2.msra.mxu0 0.0
    %273 = vmatprep.subr.mxu0 0.0
    %274 = vmatpush2.msra.mxu0 0.0
    %275 = vmatprep.subr.mxu0 0.0
    %276 = vmatpush2.msra.mxu0 0.0
    %277 = vmatprep.mubr.f32.mxu0 0.0
    %278 = vmatmul.mubr.f32.gmra.mxu0 %v189
    %v279 = vpop.f32.mrf.mxu0
    %v280 = vadd.f32 %v211, %v279
    %v281 = vpop.f32.mrf.mxu0
    %282 = vdwg.mxu0
    %v283 = vmul.f32 %v280, 0.5
    %v284 = vmul.f32 %v280, 0.70710677
    %v285 = verf.f32.pop %v284
    %v286 = vadd.f32 %v285, 1.0
    %v287 = vmul.f32 %v283, %v286
    %v288 = vld [vmem:[#allocation10] sm:$0xff]
    %v289 = vld [vmem:[#allocation10 + $0x8] sm:$0xff]
    %v290 = vld [vmem:[#allocation10 + $0x10] sm:$0xff]
    %v291 = vld [vmem:[#allocation10 + $0x18] sm:$0xff]
    %v292 = vld [vmem:[#allocation10 + $0x20] sm:$0xff]
    %v293 = vld [vmem:[#allocation10 + $0x28] sm:$0xff]
    %v294 = vld [vmem:[#allocation10 + $0x30] sm:$0xff]
    %v295 = vld [vmem:[#allocation10 + $0x38] sm:$0xff]
    %v296 = vld [vmem:[#allocation10 + $0x40] sm:$0xff]
    %v297 = vld [vmem:[#allocation10 + $0x48] sm:$0xff]
    %v298 = vld [vmem:[#allocation10 + $0x50] sm:$0xff]
    %v299 = vld [vmem:[#allocation10 + $0x58] sm:$0xff]
    %v300 = vld [vmem:[#allocation10 + $0x60] sm:$0xff]
    %v301 = vld [vmem:[#allocation10 + $0x68] sm:$0xff]
    %v302 = vld [vmem:[#allocation10 + $0x70] sm:$0xff]
    %v303 = vld [vmem:[#allocation10 + $0x78] sm:$0xff]
    %v304 = vld [vmem:[%s7] sm:$0x1]
    %v306 = vlaneseq
    %v307 = vshrl.u32 %v306, 7
    %v308 = vsub.s32 0, %v307
    %v309 = vrot.slane %v304, %v308
    %311 = vmatprep.subr.mxu0 0.0
    %312 = vmatpush1.msra.mxu0 %v303
    %313 = vmatprep.subr.mxu0 0.0
    %314 = vmatpush1.msra.mxu0 %v302
    %315 = vmatprep.subr.mxu0 0.0
    %316 = vmatpush1.msra.mxu0 %v301
    %317 = vmatprep.subr.mxu0 0.0
    %318 = vmatpush1.msra.mxu0 %v300
    %319 = vmatprep.subr.mxu0 0.0
    %320 = vmatpush1.msra.mxu0 %v299
    %321 = vmatprep.subr.mxu0 0.0
    %322 = vmatpush1.msra.mxu0 %v298
    %323 = vmatprep.subr.mxu0 0.0
    %324 = vmatpush1.msra.mxu0 %v297
    %325 = vmatprep.subr.mxu0 0.0
    %326 = vmatpush1.msra.mxu0 %v296
    %327 = vmatprep.subr.mxu0 0.0
    %328 = vmatpush1.msra.mxu0 %v295
    %329 = vmatprep.subr.mxu0 0.0
    %330 = vmatpush1.msra.mxu0 %v294
    %331 = vmatprep.subr.mxu0 0.0
    %332 = vmatpush1.msra.mxu0 %v293
    %333 = vmatprep.subr.mxu0 0.0
    %334 = vmatpush1.msra.mxu0 %v292
    %335 = vmatprep.subr.mxu0 0.0
    %336 = vmatpush1.msra.mxu0 %v291
    %337 = vmatprep.subr.mxu0 0.0
    %338 = vmatpush1.msra.mxu0 %v290
    %339 = vmatprep.subr.mxu0 0.0
    %340 = vmatpush1.msra.mxu0 %v289
    %341 = vmatprep.subr.mxu0 0.0
    %342 = vmatpush1.msra.mxu0 %v288
    %343 = vmatprep.subr.mxu0 0.0
    %344 = vmatpush2.msra.mxu0 0.0
    %345 = vmatprep.subr.mxu0 0.0
    %346 = vmatpush2.msra.mxu0 0.0
    %347 = vmatprep.subr.mxu0 0.0
    %348 = vmatpush2.msra.mxu0 0.0
    %349 = vmatprep.subr.mxu0 0.0
    %350 = vmatpush2.msra.mxu0 0.0
    %351 = vmatprep.subr.mxu0 0.0
    %352 = vmatpush2.msra.mxu0 0.0
    %353 = vmatprep.subr.mxu0 0.0
    %354 = vmatpush2.msra.mxu0 0.0
    %355 = vmatprep.subr.mxu0 0.0
    %356 = vmatpush2.msra.mxu0 0.0
    %357 = vmatprep.subr.mxu0 0.0
    %358 = vmatpush2.msra.mxu0 0.0
    %359 = vmatprep.subr.mxu0 0.0
    %360 = vmatpush2.msra.mxu0 0.0
    %361 = vmatprep.subr.mxu0 0.0
    %362 = vmatpush2.msra.mxu0 0.0
    %363 = vmatprep.subr.mxu0 0.0
    %364 = vmatpush2.msra.mxu0 0.0
    %365 = vmatprep.subr.mxu0 0.0
    %366 = vmatpush2.msra.mxu0 0.0
    %367 = vmatprep.subr.mxu0 0.0
    %368 = vmatpush2.msra.mxu0 0.0
    %369 = vmatprep.subr.mxu0 0.0
    %370 = vmatpush2.msra.mxu0 0.0
    %371 = vmatprep.subr.mxu0 0.0
    %372 = vmatpush2.msra.mxu0 0.0
    %373 = vmatprep.subr.mxu0 0.0
    %374 = vmatpush2.msra.mxu0 0.0
    %375 = vmatprep.mubr.f32.mxu0 0.0
    %376 = vmatmul.mubr.f32.gmra.mxu0 %v287
    %v377 = vpop.f32.mrf.mxu0
    %v378 = vadd.f32 %v309, %v377
    %v379 = vpop.f32.mrf.mxu0
    %380 = vdwg.mxu0
    %v381 = vld [vmem:[#allocation5] sm:$0xff]
    %v382 = vld [vmem:[%s8] sm:$0xf]
    %vm383 = vcmask 31744
    %v385 = vsel %vm383, %v381, 0
    %vm387 = vcmask 1043456
    %v389 = vsel %vm387, %v382, 0
    %391 = vmatprep.subr.mxu0 0.0
    %392 = vmatpush1.msra.mxu0 0.0
    %393 = vmatprep.subr.mxu0 0.0
    %394 = vmatpush1.msra.mxu0 0.0
    %395 = vmatprep.subr.mxu0 0.0
    %396 = vmatpush1.msra.mxu0 0.0
    %397 = vmatprep.subr.mxu0 0.0
    %398 = vmatpush1.msra.mxu0 0.0
    %399 = vmatprep.subr.mxu0 0.0
    %400 = vmatpush1.msra.mxu0 0.0
    %401 = vmatprep.subr.mxu0 0.0
    %402 = vmatpush1.msra.mxu0 0.0
    %403 = vmatprep.subr.mxu0 0.0
    %404 = vmatpush1.msra.mxu0 0.0
    %405 = vmatprep.subr.mxu0 0.0
    %406 = vmatpush1.msra.mxu0 0.0
    %407 = vmatprep.subr.mxu0 0.0
    %408 = vmatpush1.msra.mxu0 0.0
    %409 = vmatprep.subr.mxu0 0.0
    %410 = vmatpush1.msra.mxu0 0.0
    %411 = vmatprep.subr.mxu0 0.0
    %412 = vmatpush1.msra.mxu0 0.0
    %413 = vmatprep.subr.mxu0 0.0
    %414 = vmatpush1.msra.mxu0 0.0
    %415 = vmatprep.subr.mxu0 0.0
    %416 = vmatpush1.msra.mxu0 0.0
    %417 = vmatprep.subr.mxu0 0.0
    %418 = vmatpush1.msra.mxu0 0.0
    %419 = vmatprep.subr.mxu0 0.0
    %420 = vmatpush1.msra.mxu0 0.0
    %421 = vmatprep.subr.mxu0 0.0
    %422 = vmatpush1.msra.mxu0 %v389
    %423 = vmatprep.subr.mxu0 0.0
    %424 = vmatpush2.msra.mxu0 0.0
    %425 = vmatprep.subr.mxu0 0.0
    %426 = vmatpush2.msra.mxu0 0.0
    %427 = vmatprep.subr.mxu0 0.0
    %428 = vmatpush2.msra.mxu0 0.0
    %429 = vmatprep.subr.mxu0 0.0
    %430 = vmatpush2.msra.mxu0 0.0
    %431 = vmatprep.subr.mxu0 0.0
    %432 = vmatpush2.msra.mxu0 0.0
    %433 = vmatprep.subr.mxu0 0.0
    %434 = vmatpush2.msra.mxu0 0.0
    %435 = vmatprep.subr.mxu0 0.0
    %436 = vmatpush2.msra.mxu0 0.0
    %437 = vmatprep.subr.mxu0 0.0
    %438 = vmatpush2.msra.mxu0 0.0
    %439 = vmatprep.subr.mxu0 0.0
    %440 = vmatpush2.msra.mxu0 0.0
    %441 = vmatprep.subr.mxu0 0.0
    %442 = vmatpush2.msra.mxu0 0.0
    %443 = vmatprep.subr.mxu0 0.0
    %444 = vmatpush2.msra.mxu0 0.0
    %445 = vmatprep.subr.mxu0 0.0
    %446 = vmatpush2.msra.mxu0 0.0
    %447 = vmatprep.subr.mxu0 0.0
    %448 = vmatpush2.msra.mxu0 0.0
    %449 = vmatprep.subr.mxu0 0.0
    %450 = vmatpush2.msra.mxu0 0.0
    %451 = vmatprep.subr.mxu0 0.0
    %452 = vmatpush2.msra.mxu0 0.0
    %453 = vmatprep.subr.mxu0 0.0
    %454 = vmatpush2.msra.mxu0 0.0
    %455 = vmatprep.mubr.f32.mxu0 0.0
    %456 = vmatmul.mubr.f32.gmra.mxu0 %v385
    %v457 = vpop.f32.mrf.mxu0
    %v458 = vadd.f32 0.0, %v457
    %v459 = vpop.f32.mrf.mxu0
    %460 = vdwg.mxu0
    %v461 = vadd.f32 %v378, %v458
    %462 = vst [vmem:[#allocation11] sm:$0xff] %v461
    // Predicated region
    $region58: #{tpu_custom_call.1} parent=1 // pred_check
      _
    $region59: #{tpu_custom_call.1} parent=1 // pred_check_branch
      %464 = sbr.rel (0) target = $region61
    $region60: #{tpu_custom_call.1} parent=1 // pred_region
      %s466 = ssub.s32 128, 64
      %467 = vsyncadd [#allocation4], %s466
      %s468 = sshll.u32 [#allocation11], 4
      %s469 = int_to_ptr.vmem [resolvable:$true] %s468
      %474 = dma.vmem_to_hbm [thread:$0]  %s469, 64, %s9, [#allocation4], 64, 64, 4
    $region61: #{tpu_custom_call.1} parent=1 // pred_fallthru
      _
    // Predicated region
    $region62: #{tpu_custom_call.1} parent=1 // pred_check
      _
    $region63: #{tpu_custom_call.1} parent=1 // pred_check_branch
      %476 = sbr.rel (0) target = $region65
    $region64: #{tpu_custom_call.1} parent=1 // pred_region
      %477 = dma.done [#allocation4], 128
    $region65: #{tpu_custom_call.1} parent=1 // pred_fallthru
      _
    %478 = vsyncpa [#allocation3], 1
    %479 = vsyncpa [#allocation6], 1
    %480 = vsyncpa [#allocation9], 1
    %481 = vsyncpa [#allocation4], 1

</llo_original>
